<compile_context>
chip_gen: v6e
topology: v6e:2x2x1
jax: 0.10.0
libtpu: 0.0.40
codegen_flags: <defaults>
</compile_context>

<pallas_src>
import jax
import jax.numpy as jnp
import numpy as np
from jax.experimental import pallas as pl
from jax.experimental.pallas import tpu as pltpu

_LANE = 128
_SUBLANE = 8


def _round_up(x, m):
    return (x + m - 1) // m * m


def _policy_kernel(x_ref, w1_ref, b1_ref, w2_ref, b2_ref, w3_ref, b3_ref,
                   ma_ref, o_ref):
    """One batch tile of the actor MLP: 3 matmuls + bias + ReLU + tanh + scale."""
    mm_dtype = w1_ref.dtype              # bf16 fast path or f32 exact path
    x = x_ref[...].astype(mm_dtype)      # no-op if the state already matches

    h1 = jnp.dot(x, w1_ref[...], preferred_element_type=jnp.float32) + b1_ref[...]
    h1 = jnp.maximum(h1, 0.0)            # activations stay f32 (v5e VPU/EUP)

    h2 = jnp.dot(h1.astype(mm_dtype), w2_ref[...],
                 preferred_element_type=jnp.float32) + b2_ref[...]
    h2 = jnp.maximum(h2, 0.0)

    out = jnp.dot(h2.astype(mm_dtype), w3_ref[...],
                  preferred_element_type=jnp.float32) + b3_ref[...]
    o_ref[...] = (ma_ref[0] * jnp.tanh(out)).astype(o_ref.dtype)


def prepare_policy_params(params, weights_dtype=jnp.bfloat16):
    """Pad the hidden dim to a lane multiple and cast weights ONCE (not per call).

    Zero padding of the hidden dim is numerically exact (padded rows/columns
    contribute exact 0.0 through ReLU).  state_dim / action_dim are left at
    their true sizes so per-call HBM traffic is not inflated.
    """
    w1, b1, w2, b2, w3, b3 = (params["w1"], params["b1"], params["w2"],
                              params["b2"], params["w3"], params["b3"])
    Ds, Dh = w1.shape
    Da = w3.shape[1]
    # NOTE: rounding Dh to 256 can improve MXU occupancy on v6e/v7x for large,
    # compute-bound layers; 128 is the safe default (v5e MXU is 128x128).
    Dh_p = _round_up(Dh, _LANE)

    def pad2(a, rows, cols):
        return jnp.pad(a, ((0, rows - a.shape[0]), (0, cols - a.shape[1])))

    return {
        "w1": pad2(w1, Ds, Dh_p).astype(weights_dtype),     # (Ds,   Dh_p)
        "b1": pad2(b1, 1, Dh_p).astype(jnp.float32),        # (1,    Dh_p)
        "w2": pad2(w2, Dh_p, Dh_p).astype(weights_dtype),   # (Dh_p, Dh_p)
        "b2": pad2(b2, 1, Dh_p).astype(jnp.float32),
        "w3": pad2(w3, Dh_p, Da).astype(weights_dtype),     # (Dh_p, Da)
        "b3": pad2(b3, 1, Da).astype(jnp.float32),          # (1,    Da)
        "dims": (Ds, Dh, Dh_p, Da),
    }


def policy_forward(state, prepped, max_action, *, batch_tile=1024,
                   vmem_limit_bytes=None):
    """state: (B, state_dim), f32 (or bf16 for the fast path).  prepped: from
    prepare_policy_params().  max_action may be a Python float or JAX scalar."""
    Ds, Dh, Dh_p, Da = prepped["dims"]
    w1p, b1p = prepped["w1"], prepped["b1"]
    w2p, b2p = prepped["w2"], prepped["b2"]
    w3p, b3p = prepped["w3"], prepped["b3"]

    B, Ds_in = state.shape
    assert Ds_in == Ds, "state feature dim does not match prepared params"

    # --- batch tiling ------------------------------------------------------
    # * multiple of 16 (bf16 sublane packing), large tiles to amortize the
    #   ~0.35us per-grid-step overhead,
    # * at least 2 tiles when B >= 32 so the "parallel" axis feeds both
    #   TensorCores on v7x,
    # * small B: a single full-array block (no alignment constraint needed).
    batch_tile = max(16, _round_up(batch_tile, 16))
    if B >= 32:
        TB = min(batch_tile, _round_up(-(-B // 2), 16))
    else:
        TB = B
    grid = (pl.cdiv(B, TB),)
    rows = grid[0] * TB                  # rows actually pushed through the MXU

    ma = jnp.full((1,), max_action, dtype=jnp.float32)

    def resident(shape):
        # Constant index_map -> fetched once, kept VMEM-resident; single buffer
        # (double-buffering a constant block is pure VMEM waste).
        return pl.BlockSpec(shape, lambda i: (0, 0),
                            pipeline_mode=pl.Buffered(1))

    w_itemsize = jnp.dtype(w1p.dtype).itemsize
    cost = pl.CostEstimate(
        flops=2 * rows * (Ds * Dh_p + Dh_p * Dh_p + Dh_p * Da),
        transcendentals=rows * Da,
        bytes_accessed=int(
            rows * Ds * state.dtype.itemsize
            + (w1p.size + w2p.size + w3p.size) * w_itemsize
            + (b1p.size + b2p.size + b3p.size) * 4
            + B * Da * 4),
    )

    return pl.pallas_call(
        _policy_kernel,
        out_shape=jax.ShapeDtypeStruct((B, Da), jnp.float32),
        grid=grid,
        in_specs=[
            # State tiles: full-extent (unpadded) feature dim, double-buffered
            # against compute.  (Bump to pl.Buffered(3) if DMA is exposed.)
            pl.BlockSpec((TB, Ds), lambda i: (i, 0)),
            resident(w1p.shape), resident(b1p.shape),
            resident(w2p.shape), resident(b2p.shape),
            resident(w3p.shape), resident(b3p.shape),
            pl.BlockSpec(memory_space=pltpu.MemorySpace.SMEM),   # max_action
        ],
        # Unpadded action dim: ~32x less writeback than a 128-lane f32 pad.
        out_specs=pl.BlockSpec((TB, Da), lambda i: (i, 0)),
        compiler_params=pltpu.CompilerParams(
            dimension_semantics=("parallel",),   # batch tiles across v7x's 2 TCs
            vmem_limit_bytes=vmem_limit_bytes),  # set explicitly for very large Dh
        cost_estimate=cost,
    )(state, w1p, b1p, w2p, b2p, w3p, b3p, ma)


def init_policy_params(key, state_dim, action_dim, hidden_dim):
    """Deterministic init mirroring torch.nn.Linear (U[-1/sqrt(fan_in), +1/sqrt(fan_in)]).

    Weights stored transposed: (in_features, out_features); biases (1, out_features).
    """
    ks = jax.random.split(key, 6)

    def linear(kw, kb, fan_in, fan_out):
        bound = 1.0 / np.sqrt(fan_in)
        w = jax.random.uniform(kw, (fan_in, fan_out), jnp.float32, -bound, bound)
        b = jax.random.uniform(kb, (1, fan_out), jnp.float32, -bound, bound)
        return w, b

    w1, b1 = linear(ks[0], ks[1], state_dim, hidden_dim)
    w2, b2 = linear(ks[2], ks[3], hidden_dim, hidden_dim)
    w3, b3 = linear(ks[4], ks[5], hidden_dim, action_dim)
    return {"w1": w1, "b1": b1, "w2": w2, "b2": b2, "w3": w3, "b3": b3}


def policy_forward_ref(state, params, max_action, weights_dtype=jnp.float32):
    """Pure-JAX reference (optionally with the same bf16 matmul casts)."""
    def layer(x, w, b):
        return jnp.dot(x.astype(weights_dtype), w.astype(weights_dtype),
                       preferred_element_type=jnp.float32) + b

    h1 = jnp.maximum(layer(state, params["w1"], params["b1"]), 0.0)
    h2 = jnp.maximum(layer(h1, params["w2"], params["b2"]), 0.0)
    out = layer(h2, params["w3"], params["b3"])
    return max_action * jnp.tanh(out)


if __name__ == "__main__":
    # Small shapes consistent with the module's forward:
    batch, state_dim, action_dim, hidden_dim = 8, 16, 4, 32
    max_action = 2.0

    key = jax.random.PRNGKey(0)
    k_params, k_state, k_big, k_p2, k_s2 = jax.random.split(key, 5)

    params = init_policy_params(k_params, state_dim, action_dim, hidden_dim)
    state = jax.random.normal(k_state, (batch, state_dim), jnp.float32)

    # 1) exact path (f32 weights) vs f32 reference — tight tolerance.
    prepped_f32 = prepare_policy_params(params, weights_dtype=jnp.float32)
    out_f32 = jax.block_until_ready(policy_forward(state, prepped_f32, max_action))
    ref_f32 = policy_forward_ref(state, params, max_action)
    np.testing.assert_allclose(np.asarray(out_f32), np.asarray(ref_f32),
                               rtol=1e-5, atol=1e-5)
    assert out_f32.shape == (batch, action_dim)

    # 2) bf16 fast path (bf16 weights/matmuls, f32 accumulation + activations)
    #    vs a bf16-aware reference (tight) and the f32 reference (loose).
    prepped_bf16 = prepare_policy_params(params)  # bf16 weights (default)
    out_bf16 = jax.block_until_ready(policy_forward(state, prepped_bf16, max_action))
    ref_bf16 = policy_forward_ref(state, params, max_action,
                                  weights_dtype=jnp.bfloat16)
    np.testing.assert_allclose(np.asarray(out_bf16), np.asarray(ref_bf16),
                               rtol=2e-3, atol=2e-3)
    np.testing.assert_allclose(np.asarray(out_bf16), np.asarray(ref_f32),
                               rtol=5e-2, atol=5e-2)

    # 3) large, non-tile-multiple batch: exercises the cdiv grid (ragged last
    #    tile with masked output rows) and the >=2-tile megacore split.
    big_B = 1000
    big_state = jax.random.normal(k_big, (big_B, state_dim), jnp.float32)
    out_big = jax.block_until_ready(policy_forward(big_state, prepped_bf16, max_action))
    ref_big = policy_forward_ref(big_state, params, max_action,
                                 weights_dtype=jnp.bfloat16)
    np.testing.assert_allclose(np.asarray(out_big), np.asarray(ref_big),
                               rtol=2e-3, atol=2e-3)
    assert out_big.shape == (big_B, action_dim)

    # 4) realistic DDPG sizes (module's default hidden=256), non-lane-aligned
    #    state/action dims, batch not a multiple of the tile.
    sd2, ad2, hd2, B2 = 24, 6, 256, 100
    params2 = init_policy_params(k_p2, sd2, ad2, hd2)
    state2 = jax.random.normal(k_s2, (B2, sd2), jnp.float32)
    prepped2 = prepare_policy_params(params2)
    out2 = jax.block_until_ready(policy_forward(state2, prepped2, max_action))
    ref2 = policy_forward_ref(state2, params2, max_action,
                              weights_dtype=jnp.bfloat16)
    np.testing.assert_allclose(np.asarray(out2), np.asarray(ref2),
                               rtol=2e-3, atol=2e-3)
    assert out2.shape == (B2, ad2)

    print("KERNEL_OK")
</pallas_src>

<mosaic_0001>
module attributes {stable_mosaic.version = 11 : i64} {
  func.func @_policy_kernel(%arg0: i32, %arg1: memref<8x16xf32, #tpu.memory_space<vmem>>, %arg2: memref<16x128xf32, #tpu.memory_space<vmem>>, %arg3: memref<1x128xf32, #tpu.memory_space<vmem>>, %arg4: memref<128x128xf32, #tpu.memory_space<vmem>>, %arg5: memref<1x128xf32, #tpu.memory_space<vmem>>, %arg6: memref<128x4xf32, #tpu.memory_space<vmem>>, %arg7: memref<1x4xf32, #tpu.memory_space<vmem>>, %arg8: memref<1xf32, #tpu.memory_space<smem>>, %arg9: memref<8x4xf32, #tpu.memory_space<vmem>>) attributes {dimension_semantics = [#tpu.dimension_semantics<parallel>], iteration_bounds = array<i64: 1>, scalar_prefetch = 0 : i64, scratch_operands = 0 : i64, tpu.core_type = #tpu.core_type<tc>, window_params = [{transform_indices = @transform_0, window_bounds = array<i64: 8, 16>}, {pipeline_mode = #tpu.pipeline_mode<synchronous>, transform_indices = @transform_1, window_bounds = array<i64: 16, 128>}, {pipeline_mode = #tpu.pipeline_mode<synchronous>, transform_indices = @transform_2, window_bounds = array<i64: 1, 128>}, {pipeline_mode = #tpu.pipeline_mode<synchronous>, transform_indices = @transform_3, window_bounds = array<i64: 128, 128>}, {pipeline_mode = #tpu.pipeline_mode<synchronous>, transform_indices = @transform_4, window_bounds = array<i64: 1, 128>}, {pipeline_mode = #tpu.pipeline_mode<synchronous>, transform_indices = @transform_5, window_bounds = array<i64: 128, 4>}, {pipeline_mode = #tpu.pipeline_mode<synchronous>, transform_indices = @transform_6, window_bounds = array<i64: 1, 4>}, {transform_indices = @transform_7, window_bounds = array<i64: 1>}, {transform_indices = @transform_8, window_bounds = array<i64: 8, 4>}]} {
    %c0 = arith.constant 0 : index
    %c0_0 = arith.constant 0 : index
    %0 = vector.load %arg1[%c0, %c0_0] : memref<8x16xf32, #tpu.memory_space<vmem>>, vector<8x16xf32>
    %c0_1 = arith.constant 0 : index
    %c0_2 = arith.constant 0 : index
    %1 = vector.load %arg2[%c0_1, %c0_2] : memref<16x128xf32, #tpu.memory_space<vmem>>, vector<16x128xf32>
    %cst = arith.constant dense<0.000000e+00> : vector<8x128xf32>
    %2 = tpu.matmul %0, %1, %cst {dimension_numbers = #tpu.dot_dimension_numbers<[1], [0], [0], [1], [0, 0, 1, 1], [], []>} : vector<8x16xf32>, vector<16x128xf32>, vector<8x128xf32> -> vector<8x128xf32>
    %c0_3 = arith.constant 0 : index
    %c0_4 = arith.constant 0 : index
    %3 = vector.load %arg3[%c0_3, %c0_4] : memref<1x128xf32, #tpu.memory_space<vmem>>, vector<1x128xf32>
    %4 = vector.broadcast %3 : vector<1x128xf32> to vector<8x128xf32>
    %5 = arith.addf %2, %4 : vector<8x128xf32>
    %cst_5 = arith.constant 0.000000e+00 : f32
    %6 = vector.broadcast %cst_5 : f32 to vector<8x128xf32>
    %7 = arith.maximumf %5, %6 : vector<8x128xf32>
    %c0_6 = arith.constant 0 : index
    %c0_7 = arith.constant 0 : index
    %8 = vector.load %arg4[%c0_6, %c0_7] : memref<128x128xf32, #tpu.memory_space<vmem>>, vector<128x128xf32>
    %cst_8 = arith.constant dense<0.000000e+00> : vector<8x128xf32>
    %9 = tpu.matmul %7, %8, %cst_8 {dimension_numbers = #tpu.dot_dimension_numbers<[1], [0], [0], [1], [0, 0, 1, 1], [], []>} : vector<8x128xf32>, vector<128x128xf32>, vector<8x128xf32> -> vector<8x128xf32>
    %c0_9 = arith.constant 0 : index
    %c0_10 = arith.constant 0 : index
    %10 = vector.load %arg5[%c0_9, %c0_10] : memref<1x128xf32, #tpu.memory_space<vmem>>, vector<1x128xf32>
    %11 = vector.broadcast %10 : vector<1x128xf32> to vector<8x128xf32>
    %12 = arith.addf %9, %11 : vector<8x128xf32>
    %cst_11 = arith.constant 0.000000e+00 : f32
    %13 = vector.broadcast %cst_11 : f32 to vector<8x128xf32>
    %14 = arith.maximumf %12, %13 : vector<8x128xf32>
    %c0_12 = arith.constant 0 : index
    %c0_13 = arith.constant 0 : index
    %15 = vector.load %arg6[%c0_12, %c0_13] : memref<128x4xf32, #tpu.memory_space<vmem>>, vector<128x4xf32>
    %cst_14 = arith.constant dense<0.000000e+00> : vector<8x4xf32>
    %16 = tpu.matmul %14, %15, %cst_14 {dimension_numbers = #tpu.dot_dimension_numbers<[1], [0], [0], [1], [0, 0, 1, 1], [], []>} : vector<8x128xf32>, vector<128x4xf32>, vector<8x4xf32> -> vector<8x4xf32>
    %c0_15 = arith.constant 0 : index
    %c0_16 = arith.constant 0 : index
    %17 = vector.load %arg7[%c0_15, %c0_16] : memref<1x4xf32, #tpu.memory_space<vmem>>, vector<1x4xf32>
    %18 = vector.broadcast %17 : vector<1x4xf32> to vector<8x4xf32>
    %19 = arith.addf %16, %18 : vector<8x4xf32>
    %c0_17 = arith.constant 0 : index
    %20 = memref.load %arg8[%c0_17] : memref<1xf32, #tpu.memory_space<smem>>
    %21 = math.tanh %19 : vector<8x4xf32>
    %22 = vector.broadcast %20 : f32 to vector<8x4xf32>
    %23 = arith.mulf %22, %21 : vector<8x4xf32>
    %c0_18 = arith.constant 0 : index
    %c0_19 = arith.constant 0 : index
    %24 = vector.load %arg9[%c0_18, %c0_19] : memref<8x4xf32, #tpu.memory_space<vmem>>, vector<8x4xf32>
    tpu.vector_store %arg9[%c0_18, %c0_19], %23 {strides = array<i32>} : memref<8x4xf32, #tpu.memory_space<vmem>>, vector<8x4xf32>,
    return
  }
  func.func @transform_0(%arg0: i32) -> (i32, i32) {
    %c0_i32 = arith.constant 0 : i32
    %c0_i32_0 = arith.constant 0 : i32
    return %arg0, %c0_i32 : i32, i32
  }
  func.func @transform_1(%arg0: i32) -> (i32, i32) {
    %c0_i32 = arith.constant 0 : i32
    %c0_i32_0 = arith.constant 0 : i32
    %c0_i32_1 = arith.constant 0 : i32
    return %c0_i32, %c0_i32_0 : i32, i32
  }
  func.func @transform_2(%arg0: i32) -> (i32, i32) {
    %c0_i32 = arith.constant 0 : i32
    %c0_i32_0 = arith.constant 0 : i32
    %c0_i32_1 = arith.constant 0 : i32
    return %c0_i32, %c0_i32_0 : i32, i32
  }
  func.func @transform_3(%arg0: i32) -> (i32, i32) {
    %c0_i32 = arith.constant 0 : i32
    %c0_i32_0 = arith.constant 0 : i32
    %c0_i32_1 = arith.constant 0 : i32
    return %c0_i32, %c0_i32_0 : i32, i32
  }
  func.func @transform_4(%arg0: i32) -> (i32, i32) {
    %c0_i32 = arith.constant 0 : i32
    %c0_i32_0 = arith.constant 0 : i32
    %c0_i32_1 = arith.constant 0 : i32
    return %c0_i32, %c0_i32_0 : i32, i32
  }
  func.func @transform_5(%arg0: i32) -> (i32, i32) {
    %c0_i32 = arith.constant 0 : i32
    %c0_i32_0 = arith.constant 0 : i32
    %c0_i32_1 = arith.constant 0 : i32
    return %c0_i32, %c0_i32_0 : i32, i32
  }
  func.func @transform_6(%arg0: i32) -> (i32, i32) {
    %c0_i32 = arith.constant 0 : i32
    %c0_i32_0 = arith.constant 0 : i32
    %c0_i32_1 = arith.constant 0 : i32
    return %c0_i32, %c0_i32_0 : i32, i32
  }
  func.func @transform_7(%arg0: i32) -> i32 {
    %c0_i32 = arith.constant 0 : i32
    %c0_i32_0 = arith.constant 0 : i32
    return %c0_i32 : i32
  }
  func.func @transform_8(%arg0: i32) -> (i32, i32) {
    %c0_i32 = arith.constant 0 : i32
    %c0_i32_0 = arith.constant 0 : i32
    return %arg0, %c0_i32 : i32, i32
  }
}

</mosaic_0001>

<llo_original>
// kernel: tpu_custom_call.1
$region0: #{tpu_custom_call.1}
  #allocation0 [shape = 'u32[]', space=smem, size = 0x4, offset = 0x4, fixed_abs, tag = 'smem constant byte address 0x4 - core index']
  #allocation1 [shape = 'u32[144,128]{1,0:T(1,128)}', space=vmem, size = 0x12000, scoped, tag = 'internal scratch']
  #allocation2 [shape = 'f32[1]{0:T(128)S(6)}', space=smem, size = 0x200, scoped, tag = 'scoped memory for tpu_custom_call.1']
  %s0 = inlined_call_operand.vmem [shape: f32[8,16], index: 0, kind: input, shape index: {}]
  %s1 = inlined_call_operand.hbm [shape: f32[16,128], index: 1, kind: input, shape index: {}]
  %s2 = inlined_call_operand.vmem [shape: f32[1,128], index: 2, kind: input, shape index: {}]
  %s3 = inlined_call_operand.vmem [shape: f32[128,128], index: 3, kind: input, shape index: {}]
  %s4 = inlined_call_operand.hbm [shape: f32[1,128], index: 4, kind: input, shape index: {}]
  %s5 = inlined_call_operand.vmem [shape: f32[128,4], index: 5, kind: input, shape index: {}]
  %s6 = inlined_call_operand.vmem [shape: f32[1,4], index: 6, kind: input, shape index: {}]
  %s7 = inlined_call_operand.<no memory space> [shape: f32[1], index: 7, kind: input, shape index: {}]
  %s8 = inlined_call_operand.vmem [shape: f32[8,4], index: 8, kind: output, shape index: {}]
  %s9 = sld [smem:[#allocation0]]
  $region50: #{tpu_custom_call.1} parent=0
    _
  %s11 = ssub.s32 1, %s9
  %s12 = scalar_select 0, %s11, %s9
  %13 = sst [smem:[#allocation2]] %s7
  $region1: #{tpu_custom_call.1} parent=0
    #allocation3 [shape = 'u8[8192]{0}', space=vmem, size = 0x2000, scoped, tag = 'input window, operand 1, single buffered']
    #allocation4 [shape = 's32[1]{0}', space=sflag, size = 0x4, scoped, tag = 'scoped memory for tpu_custom_call.1']
    #allocation5 [shape = 'u8[512]{0}', space=vmem, size = 0x400, scoped, tag = 'input window, operand 4, single buffered']
    #allocation6 [shape = 's32[1]{0}', space=sflag, size = 0x4, scoped, tag = 'scoped memory for tpu_custom_call.1']
    %14 = vsyncpa [#allocation4], 0
    %15 = vsyncpa [#allocation6], 0
    // Predicated region
    $region2: #{tpu_custom_call.1} parent=1 // pred_check
      _
    $region3: #{tpu_custom_call.1} parent=1 // pred_check_branch
      %17 = sbr.rel (0) target = $region5
    $region4: #{tpu_custom_call.1} parent=1 // pred_region
      _
    $region5: #{tpu_custom_call.1} parent=1 // pred_fallthru
      _
    // Predicated region
    $region6: #{tpu_custom_call.1} parent=1 // pred_check
      _
    $region7: #{tpu_custom_call.1} parent=1 // pred_check_branch
      %19 = sbr.rel (0) target = $region9
    $region8: #{tpu_custom_call.1} parent=1 // pred_region
      %s21 = ssub.s32 256, 256
      %22 = vsyncadd [#allocation4], %s21
      %s23 = sshll.u32 [#allocation3], 4
      %s24 = int_to_ptr.vmem [resolvable:$true] %s23
      %29 = dma.hbm_to_vmem [thread:$0]  %s1, 256, %s24, [#allocation4], 128, 128, 8
    $region9: #{tpu_custom_call.1} parent=1 // pred_fallthru
      _
    // Predicated region
    $region10: #{tpu_custom_call.1} parent=1 // pred_check
      _
    $region11: #{tpu_custom_call.1} parent=1 // pred_check_branch
      %31 = sbr.rel (0) target = $region13
    $region12: #{tpu_custom_call.1} parent=1 // pred_region
      _
    $region13: #{tpu_custom_call.1} parent=1 // pred_fallthru
      _
    // Predicated region
    $region14: #{tpu_custom_call.1} parent=1 // pred_check
      _
    $region15: #{tpu_custom_call.1} parent=1 // pred_check_branch
      %33 = sbr.rel (0) target = $region17
    $region16: #{tpu_custom_call.1} parent=1 // pred_region
      _
    $region17: #{tpu_custom_call.1} parent=1 // pred_fallthru
      _
    // Predicated region
    $region18: #{tpu_custom_call.1} parent=1 // pred_check
      _
    $region19: #{tpu_custom_call.1} parent=1 // pred_check_branch
      %35 = sbr.rel (0) target = $region21
    $region20: #{tpu_custom_call.1} parent=1 // pred_region
      %s37 = ssub.s32 16, 16
      %38 = vsyncadd [#allocation6], %s37
      %s40 = sshll.u32 [#allocation5], 4
      %s41 = int_to_ptr.vmem [resolvable:$true] %s40
      %43 = dma.hbm_to_vmem [thread:$0]  %s4, 16, %s41, [#allocation6]
    $region21: #{tpu_custom_call.1} parent=1 // pred_fallthru
      _
    // Predicated region
    $region22: #{tpu_custom_call.1} parent=1 // pred_check
      _
    $region23: #{tpu_custom_call.1} parent=1 // pred_check_branch
      %45 = sbr.rel (0) target = $region25
    $region24: #{tpu_custom_call.1} parent=1 // pred_region
      _
    $region25: #{tpu_custom_call.1} parent=1 // pred_fallthru
      _
    // Predicated region
    $region26: #{tpu_custom_call.1} parent=1 // pred_check
      _
    $region27: #{tpu_custom_call.1} parent=1 // pred_check_branch
      %47 = sbr.rel (0) target = $region29
    $region28: #{tpu_custom_call.1} parent=1 // pred_region
      _
    $region29: #{tpu_custom_call.1} parent=1 // pred_fallthru
      _
    // Predicated region
    $region30: #{tpu_custom_call.1} parent=1 // pred_check
      _
    $region31: #{tpu_custom_call.1} parent=1 // pred_check_branch
      %49 = sbr.rel (0) target = $region33
    $region32: #{tpu_custom_call.1} parent=1 // pred_region
      _
    $region33: #{tpu_custom_call.1} parent=1 // pred_fallthru
      _
    // Predicated region
    $region34: #{tpu_custom_call.1} parent=1 // pred_check
      _
    $region35: #{tpu_custom_call.1} parent=1 // pred_check_branch
      %51 = sbr.rel (0) target = $region37
    $region36: #{tpu_custom_call.1} parent=1 // pred_region
      %52 = dma.done [#allocation4], 256
    $region37: #{tpu_custom_call.1} parent=1 // pred_fallthru
      _
    // Predicated region
    $region38: #{tpu_custom_call.1} parent=1 // pred_check
      _
    $region39: #{tpu_custom_call.1} parent=1 // pred_check_branch
      %54 = sbr.rel (0) target = $region41
    $region40: #{tpu_custom_call.1} parent=1 // pred_region
      %55 = dma.done [#allocation6], 16
    $region41: #{tpu_custom_call.1} parent=1 // pred_fallthru
      _
    %v56 = vld [vmem:[%s0] sm:$0xff]
    %v57 = vld [vmem:[#allocation3] sm:$0xff]
    %v58 = vld [vmem:[#allocation3 + $0x8] sm:$0xff]
    %v59 = vld [vmem:[%s2] sm:$0x1]
    %v61 = vlaneseq
    %v62 = vshrl.u32 %v61, 7
    %v63 = vsub.s32 0, %v62
    %v64 = vrot.slane %v59, %v63
    %vm66 = vcmask 130048
    %v68 = vsel %vm66, %v56, 0
    %70 = vmatprep.subr.mxu0 0.0
    %71 = vmatpush1.msra.mxu0 0.0
    %72 = vmatprep.subr.mxu0 0.0
    %73 = vmatpush1.msra.mxu0 0.0
    %74 = vmatprep.subr.mxu0 0.0
    %75 = vmatpush1.msra.mxu0 0.0
    %76 = vmatprep.subr.mxu0 0.0
    %77 = vmatpush1.msra.mxu0 0.0
    %78 = vmatprep.subr.mxu0 0.0
    %79 = vmatpush1.msra.mxu0 0.0
    %80 = vmatprep.subr.mxu0 0.0
    %81 = vmatpush1.msra.mxu0 0.0
    %82 = vmatprep.subr.mxu0 0.0
    %83 = vmatpush1.msra.mxu0 0.0
    %84 = vmatprep.subr.mxu0 0.0
    %85 = vmatpush1.msra.mxu0 0.0
    %86 = vmatprep.subr.mxu0 0.0
    %87 = vmatpush1.msra.mxu0 0.0
    %88 = vmatprep.subr.mxu0 0.0
    %89 = vmatpush1.msra.mxu0 0.0
    %90 = vmatprep.subr.mxu0 0.0
    %91 = vmatpush1.msra.mxu0 0.0
    %92 = vmatprep.subr.mxu0 0.0
    %93 = vmatpush1.msra.mxu0 0.0
    %94 = vmatprep.subr.mxu0 0.0
    %95 = vmatpush1.msra.mxu0 0.0
    %96 = vmatprep.subr.mxu0 0.0
    %97 = vmatpush1.msra.mxu0 0.0
    %98 = vmatprep.subr.mxu0 0.0
    %99 = vmatpush1.msra.mxu0 %v58
    %100 = vmatprep.subr.mxu0 0.0
    %101 = vmatpush1.msra.mxu0 %v57
    %102 = vmatprep.subr.mxu0 0.0
    %103 = vmatpush2.msra.mxu0 0.0
    %104 = vmatprep.subr.mxu0 0.0
    %105 = vmatpush2.msra.mxu0 0.0
    %106 = vmatprep.subr.mxu0 0.0
    %107 = vmatpush2.msra.mxu0 0.0
    %108 = vmatprep.subr.mxu0 0.0
    %109 = vmatpush2.msra.mxu0 0.0
    %110 = vmatprep.subr.mxu0 0.0
    %111 = vmatpush2.msra.mxu0 0.0
    %112 = vmatprep.subr.mxu0 0.0
    %113 = vmatpush2.msra.mxu0 0.0
    %114 = vmatprep.subr.mxu0 0.0
    %115 = vmatpush2.msra.mxu0 0.0
    %116 = vmatprep.subr.mxu0 0.0
    %117 = vmatpush2.msra.mxu0 0.0
    %118 = vmatprep.subr.mxu0 0.0
    %119 = vmatpush2.msra.mxu0 0.0
    %120 = vmatprep.subr.mxu0 0.0
    %121 = vmatpush2.msra.mxu0 0.0
    %122 = vmatprep.subr.mxu0 0.0
    %123 = vmatpush2.msra.mxu0 0.0
    %124 = vmatprep.subr.mxu0 0.0
    %125 = vmatpush2.msra.mxu0 0.0
    %126 = vmatprep.subr.mxu0 0.0
    %127 = vmatpush2.msra.mxu0 0.0
    %128 = vmatprep.subr.mxu0 0.0
    %129 = vmatpush2.msra.mxu0 0.0
    %130 = vmatprep.subr.mxu0 0.0
    %131 = vmatpush2.msra.mxu0 0.0
    %132 = vmatprep.subr.mxu0 0.0
    %133 = vmatpush2.msra.mxu0 0.0
    %134 = vmatprep.mubr.f32.mxu0 0.0
    %135 = vmatmul.mubr.f32.gmra.mxu0 %v68
    %v136 = vpop.f32.mrf.mxu0
    %v137 = vadd.f32 %v64, %v136
    %v138 = vpop.f32.mrf.mxu0
    %139 = vdwg.mxu0
    %v140 = vmax.f32 %v137, 0.0
    %v141 = vld [vmem:[%s3] sm:$0xff]
    %v142 = vld [vmem:[%s3 + $0x8] sm:$0xff]
    %v143 = vld [vmem:[%s3 + $0x10] sm:$0xff]
    %v144 = vld [vmem:[%s3 + $0x18] sm:$0xff]
    %v145 = vld [vmem:[%s3 + $0x20] sm:$0xff]
    %v146 = vld [vmem:[%s3 + $0x28] sm:$0xff]
    %v147 = vld [vmem:[%s3 + $0x30] sm:$0xff]
    %v148 = vld [vmem:[%s3 + $0x38] sm:$0xff]
    %v149 = vld [vmem:[%s3 + $0x40] sm:$0xff]
    %v150 = vld [vmem:[%s3 + $0x48] sm:$0xff]
    %v151 = vld [vmem:[%s3 + $0x50] sm:$0xff]
    %v152 = vld [vmem:[%s3 + $0x58] sm:$0xff]
    %v153 = vld [vmem:[%s3 + $0x60] sm:$0xff]
    %v154 = vld [vmem:[%s3 + $0x68] sm:$0xff]
    %v155 = vld [vmem:[%s3 + $0x70] sm:$0xff]
    %v156 = vld [vmem:[%s3 + $0x78] sm:$0xff]
    %v157 = vld [vmem:[#allocation5] sm:$0x1]
    %v159 = vlaneseq
    %v160 = vshrl.u32 %v159, 7
    %v161 = vsub.s32 0, %v160
    %v162 = vrot.slane %v157, %v161
    %164 = vmatprep.subr.mxu0 0.0
    %165 = vmatpush1.msra.mxu0 %v156
    %166 = vmatprep.subr.mxu0 0.0
    %167 = vmatpush1.msra.mxu0 %v155
    %168 = vmatprep.subr.mxu0 0.0
    %169 = vmatpush1.msra.mxu0 %v154
    %170 = vmatprep.subr.mxu0 0.0
    %171 = vmatpush1.msra.mxu0 %v153
    %172 = vmatprep.subr.mxu0 0.0
    %173 = vmatpush1.msra.mxu0 %v152
    %174 = vmatprep.subr.mxu0 0.0
    %175 = vmatpush1.msra.mxu0 %v151
    %176 = vmatprep.subr.mxu0 0.0
    %177 = vmatpush1.msra.mxu0 %v150
    %178 = vmatprep.subr.mxu0 0.0
    %179 = vmatpush1.msra.mxu0 %v149
    %180 = vmatprep.subr.mxu0 0.0
    %181 = vmatpush1.msra.mxu0 %v148
    %182 = vmatprep.subr.mxu0 0.0
    %183 = vmatpush1.msra.mxu0 %v147
    %184 = vmatprep.subr.mxu0 0.0
    %185 = vmatpush1.msra.mxu0 %v146
    %186 = vmatprep.subr.mxu0 0.0
    %187 = vmatpush1.msra.mxu0 %v145
    %188 = vmatprep.subr.mxu0 0.0
    %189 = vmatpush1.msra.mxu0 %v144
    %190 = vmatprep.subr.mxu0 0.0
    %191 = vmatpush1.msra.mxu0 %v143
    %192 = vmatprep.subr.mxu0 0.0
    %193 = vmatpush1.msra.mxu0 %v142
    %194 = vmatprep.subr.mxu0 0.0
    %195 = vmatpush1.msra.mxu0 %v141
    %196 = vmatprep.subr.mxu0 0.0
    %197 = vmatpush2.msra.mxu0 0.0
    %198 = vmatprep.subr.mxu0 0.0
    %199 = vmatpush2.msra.mxu0 0.0
    %200 = vmatprep.subr.mxu0 0.0
    %201 = vmatpush2.msra.mxu0 0.0
    %202 = vmatprep.subr.mxu0 0.0
    %203 = vmatpush2.msra.mxu0 0.0
    %204 = vmatprep.subr.mxu0 0.0
    %205 = vmatpush2.msra.mxu0 0.0
    %206 = vmatprep.subr.mxu0 0.0
    %207 = vmatpush2.msra.mxu0 0.0
    %208 = vmatprep.subr.mxu0 0.0
    %209 = vmatpush2.msra.mxu0 0.0
    %210 = vmatprep.subr.mxu0 0.0
    %211 = vmatpush2.msra.mxu0 0.0
    %212 = vmatprep.subr.mxu0 0.0
    %213 = vmatpush2.msra.mxu0 0.0
    %214 = vmatprep.subr.mxu0 0.0
    %215 = vmatpush2.msra.mxu0 0.0
    %216 = vmatprep.subr.mxu0 0.0
    %217 = vmatpush2.msra.mxu0 0.0
    %218 = vmatprep.subr.mxu0 0.0
    %219 = vmatpush2.msra.mxu0 0.0
    %220 = vmatprep.subr.mxu0 0.0
    %221 = vmatpush2.msra.mxu0 0.0
    %222 = vmatprep.subr.mxu0 0.0
    %223 = vmatpush2.msra.mxu0 0.0
    %224 = vmatprep.subr.mxu0 0.0
    %225 = vmatpush2.msra.mxu0 0.0
    %226 = vmatprep.subr.mxu0 0.0
    %227 = vmatpush2.msra.mxu0 0.0
    %228 = vmatprep.mubr.f32.mxu0 0.0
    %229 = vmatmul.mubr.f32.gmra.mxu0 %v140
    %v230 = vpop.f32.mrf.mxu0
    %v231 = vadd.f32 %v162, %v230
    %v232 = vpop.f32.mrf.mxu0
    %233 = vdwg.mxu0
    %v234 = vmax.f32 %v231, 0.0
    %v235 = vld [vmem:[%s5] sm:$0xff]
    %v236 = vld [vmem:[%s5 + $0x8] sm:$0xff]
    %v237 = vld [vmem:[%s5 + $0x10] sm:$0xff]
    %v238 = vld [vmem:[%s5 + $0x18] sm:$0xff]
    %v239 = vld [vmem:[%s5 + $0x20] sm:$0xff]
    %v240 = vld [vmem:[%s5 + $0x28] sm:$0xff]
    %v241 = vld [vmem:[%s5 + $0x30] sm:$0xff]
    %v242 = vld [vmem:[%s5 + $0x38] sm:$0xff]
    %v243 = vld [vmem:[%s5 + $0x40] sm:$0xff]
    %v244 = vld [vmem:[%s5 + $0x48] sm:$0xff]
    %v245 = vld [vmem:[%s5 + $0x50] sm:$0xff]
    %v246 = vld [vmem:[%s5 + $0x58] sm:$0xff]
    %v247 = vld [vmem:[%s5 + $0x60] sm:$0xff]
    %v248 = vld [vmem:[%s5 + $0x68] sm:$0xff]
    %v249 = vld [vmem:[%s5 + $0x70] sm:$0xff]
    %v250 = vld [vmem:[%s5 + $0x78] sm:$0xff]
    %v251 = vld [vmem:[%s6] sm:$0x1]
    %v253 = vlaneseq
    %v254 = vshrl.u32 %v253, 7
    %v255 = vsub.s32 0, %v254
    %v256 = vrot.slane %v251, %v255
    %258 = vmatprep.subr.mxu0 0.0
    %259 = vmatpush1.msra.mxu0 %v250
    %260 = vmatprep.subr.mxu0 0.0
    %261 = vmatpush1.msra.mxu0 %v249
    %262 = vmatprep.subr.mxu0 0.0
    %263 = vmatpush1.msra.mxu0 %v248
    %264 = vmatprep.subr.mxu0 0.0
    %265 = vmatpush1.msra.mxu0 %v247
    %266 = vmatprep.subr.mxu0 0.0
    %267 = vmatpush1.msra.mxu0 %v246
    %268 = vmatprep.subr.mxu0 0.0
    %269 = vmatpush1.msra.mxu0 %v245
    %270 = vmatprep.subr.mxu0 0.0
    %271 = vmatpush1.msra.mxu0 %v244
    %272 = vmatprep.subr.mxu0 0.0
    %273 = vmatpush1.msra.mxu0 %v243
    %274 = vmatprep.subr.mxu0 0.0
    %275 = vmatpush1.msra.mxu0 %v242
    %276 = vmatprep.subr.mxu0 0.0
    %277 = vmatpush1.msra.mxu0 %v241
    %278 = vmatprep.subr.mxu0 0.0
    %279 = vmatpush1.msra.mxu0 %v240
    %280 = vmatprep.subr.mxu0 0.0
    %281 = vmatpush1.msra.mxu0 %v239
    %282 = vmatprep.subr.mxu0 0.0
    %283 = vmatpush1.msra.mxu0 %v238
    %284 = vmatprep.subr.mxu0 0.0
    %285 = vmatpush1.msra.mxu0 %v237
    %286 = vmatprep.subr.mxu0 0.0
    %287 = vmatpush1.msra.mxu0 %v236
    %288 = vmatprep.subr.mxu0 0.0
    %289 = vmatpush1.msra.mxu0 %v235
    %290 = vmatprep.subr.mxu0 0.0
    %291 = vmatpush2.msra.mxu0 0.0
    %292 = vmatprep.subr.mxu0 0.0
    %293 = vmatpush2.msra.mxu0 0.0
    %294 = vmatprep.subr.mxu0 0.0
    %295 = vmatpush2.msra.mxu0 0.0
    %296 = vmatprep.subr.mxu0 0.0
    %297 = vmatpush2.msra.mxu0 0.0
    %298 = vmatprep.subr.mxu0 0.0
    %299 = vmatpush2.msra.mxu0 0.0
    %300 = vmatprep.subr.mxu0 0.0
    %301 = vmatpush2.msra.mxu0 0.0
    %302 = vmatprep.subr.mxu0 0.0
    %303 = vmatpush2.msra.mxu0 0.0
    %304 = vmatprep.subr.mxu0 0.0
    %305 = vmatpush2.msra.mxu0 0.0
    %306 = vmatprep.subr.mxu0 0.0
    %307 = vmatpush2.msra.mxu0 0.0
    %308 = vmatprep.subr.mxu0 0.0
    %309 = vmatpush2.msra.mxu0 0.0
    %310 = vmatprep.subr.mxu0 0.0
    %311 = vmatpush2.msra.mxu0 0.0
    %312 = vmatprep.subr.mxu0 0.0
    %313 = vmatpush2.msra.mxu0 0.0
    %314 = vmatprep.subr.mxu0 0.0
    %315 = vmatpush2.msra.mxu0 0.0
    %316 = vmatprep.subr.mxu0 0.0
    %317 = vmatpush2.msra.mxu0 0.0
    %318 = vmatprep.subr.mxu0 0.0
    %319 = vmatpush2.msra.mxu0 0.0
    %320 = vmatprep.subr.mxu0 0.0
    %321 = vmatpush2.msra.mxu0 0.0
    %322 = vmatprep.mubr.f32.mxu0 0.0
    %323 = vmatmul.mubr.f32.gmra.mxu0 %v234
    %v324 = vpop.f32.mrf.mxu0
    %v325 = vadd.f32 %v256, %v324
    %v326 = vpop.f32.mrf.mxu0
    %327 = vdwg.mxu0
    %s328 = sld [smem:[#allocation2]]
    %v329 = vtanh.pop %v325
    %v330 = vstv %s328
    %v331 = vmul.f32 %v330, %v329
    %vm332 = vcmask 31744
    %333 = vst.msk [vmem:[%s8] sm:$0xff] %vm332, %v331
    // Predicated region
    $region42: #{tpu_custom_call.1} parent=1 // pred_check
      _
    $region43: #{tpu_custom_call.1} parent=1 // pred_check_branch
      %335 = sbr.rel (0) target = $region45
    $region44: #{tpu_custom_call.1} parent=1 // pred_region
      _
    $region45: #{tpu_custom_call.1} parent=1 // pred_fallthru
      _
    // Predicated region
    $region46: #{tpu_custom_call.1} parent=1 // pred_check
      _
    $region47: #{tpu_custom_call.1} parent=1 // pred_check_branch
      %337 = sbr.rel (0) target = $region49
    $region48: #{tpu_custom_call.1} parent=1 // pred_region
      _
    $region49: #{tpu_custom_call.1} parent=1 // pred_fallthru
      _
    %338 = vsyncpa [#allocation4], 1
    %339 = vsyncpa [#allocation6], 1

</llo_original>
